<compile_context>
chip_gen: v6e
topology: v6e:2x2x1
jax: 0.10.0
libtpu: 0.0.40
codegen_flags: <defaults>
</compile_context>

<pallas_src>
import functools

import jax
import jax.numpy as jnp
from jax.experimental import pallas as pl
from jax.experimental.pallas import tpu as pltpu

_NEG_MASK = -1e30  # pad-column logit value; exp() underflows to exactly 0


def _round_up(x, m):
    return ((x + m - 1) // m) * m


def _make_cbow_kernel(two_n):
    def kernel(ids_ref, w1_ref, w2_ref, b2_ref, out_ref):
        # ids_ref: (bB, 2N) int32  context word indices for this batch tile
        # w1_ref : (Vp, Dp) f32    Linear1 weight^T, pre-scaled by 1/(2N)
        # w2_ref : (Dp, Vp) f32    Linear2 weight^T
        # b2_ref : (1, Vp)  f32    b1 @ W2^T + b2; pad columns = -1e30
        # out_ref: (bB, Vp) f32    log-probabilities
        bB, vp = out_ref.shape
        ids = ids_ref[...]                                           # (bB, 2N)

        # Rebuild the bag-of-words counts in-register (replaces the one-hot
        # input stream + first "sum over 2N chunks"):  2N cheap VPU compares.
        vocab = jax.lax.broadcasted_iota(jnp.int32, (bB, vp), 1)     # lane = vocab id
        counts = jnp.zeros((bB, vp), jnp.int32)
        for i in range(two_n):
            counts = counts + (vocab == ids[:, i:i + 1]).astype(jnp.int32)
        xs = counts.astype(jnp.float32)

        # h = (sum_i onehot_i) @ W1 / 2N   (scale folded into w1_ref)
        h = jnp.dot(xs, w1_ref[...], preferred_element_type=jnp.float32)      # (bB, Dp)
        # logits = h @ W2 + (b1 @ W2 + b2)   (b1 folded into b2_ref)
        logits = jnp.dot(h, w2_ref[...], preferred_element_type=jnp.float32) + b2_ref[...]

        # Numerically stable LogSoftmax along dim=1; pad columns already carry
        # -1e30 via b2_ref, so no in-kernel masking is needed.
        m = jnp.max(logits, axis=-1, keepdims=True)
        z = logits - m
        lse = jnp.log(jnp.sum(jnp.exp(z), axis=-1, keepdims=True))
        out_ref[...] = (z - lse).astype(out_ref.dtype)

    return kernel


@functools.partial(jax.jit, static_argnames=("N", "D", "V", "block_b"))
def cbow_forward_ids(ctx_ids, w1_t, b1, w2_t, b2, *, N, D, V, block_b=512):
    """CBOW forward from context indices.

    ctx_ids: (B, 2N) int32 word indices (equivalent to the module's one-hot input)
    w1_t: (V, D) Linear1 weight^T   b1: (1, D)
    w2_t: (D, V) Linear2 weight^T   b2: (1, V)
    Returns (B, V) f32 log-probabilities, identical to CBOW.forward().
    """
    B, two_n = ctx_ids.shape
    assert two_n == 2 * N

    # TPU-friendly padded shapes: vocab / hidden -> multiples of 128 lanes,
    # batch tile -> multiple of 8 sublanes.
    Vp = _round_up(V, 128)
    Dp = _round_up(D, 128)
    Bp8 = _round_up(B, 8)
    bB = min(block_b, Bp8)
    # Give the "parallel" batch axis >= 2 grid steps when the batch allows it
    # (v7x megacore: one step per TensorCore).
    if Bp8 // bB < 2 and Bp8 >= 16:
        bB = _round_up((Bp8 + 1) // 2, 8)
    Bp = _round_up(Bp8, bB)

    ids_p = jnp.pad(ctx_ids.astype(jnp.int32), ((0, Bp - B), (0, 0)))

    inv_2n = 1.0 / float(two_n)  # exact for 2N = 8
    w1p = jnp.pad(w1_t.astype(jnp.float32) * inv_2n, ((0, Vp - V), (0, Dp - D)))
    w2p = jnp.pad(w2_t.astype(jnp.float32), ((0, Dp - D), (0, Vp - V)))
    # Fold b1 through Linear2 and bake the pad-column mask into the bias.
    b2_eff = b1.astype(jnp.float32) @ w2_t.astype(jnp.float32) + b2.astype(jnp.float32)
    b2p = jnp.pad(b2_eff, ((0, 0), (0, Vp - V)), constant_values=_NEG_MASK)

    cost = pl.CostEstimate(
        flops=2 * Bp * Vp * Dp + 2 * Bp * Dp * Vp,
        transcendentals=Bp * Vp + Bp,
        bytes_accessed=(ids_p.size * 4 + w1p.size * 4 + w2p.size * 4
                        + b2p.size * 4 + Bp * Vp * 4),
    )

    out_p = pl.pallas_call(
        _make_cbow_kernel(two_n),
        out_shape=jax.ShapeDtypeStruct((Bp, Vp), jnp.float32),
        grid=(Bp // bB,),
        in_specs=[
            pl.BlockSpec((bB, two_n), lambda i: (i, 0)),   # context indices (tiny)
            pl.BlockSpec((Vp, Dp), lambda i: (0, 0)),      # W1/2N  (VMEM resident)
            pl.BlockSpec((Dp, Vp), lambda i: (0, 0)),      # W2     (VMEM resident)
            pl.BlockSpec((1, Vp), lambda i: (0, 0)),       # b1@W2 + b2 (+ pad mask)
        ],
        out_specs=pl.BlockSpec((bB, Vp), lambda i: (i, 0)),  # lane-dense output slab
        compiler_params=pltpu.CompilerParams(
            dimension_semantics=("parallel",),
        ),
        cost_estimate=cost,
    )(ids_p, w1p, w2p, b2p)

    return out_p[:B, :V]


@functools.partial(jax.jit, static_argnames=("N", "D", "V", "block_b"))
def cbow_forward(x, w1_t, b1, w2_t, b2, *, N, D, V, block_b=512):
    """Module-interface wrapper: x is (B, 2N*V) concatenated one-hot vectors."""
    B = x.shape[0]
    assert x.shape[1] == 2 * N * V
    ctx_ids = jnp.argmax(x.reshape(B, 2 * N, V), axis=-1).astype(jnp.int32)
    return cbow_forward_ids(ctx_ids, w1_t, b1, w2_t, b2, N=N, D=D, V=V,
                            block_b=block_b)


def _reference_f32(x, w1_t, b1, w2_t, b2, N, D, V):
    """Exact PyTorch-module semantics in f32."""
    h = jnp.zeros((x.shape[0], D), jnp.float32)
    for i in range(2 * N):
        h = h + x[:, i * V:(i + 1) * V] @ w1_t + b1
    h = h / (2 * N)
    logits = h @ w2_t + b2
    return jax.nn.log_softmax(logits, axis=1)


if __name__ == "__main__":
    # Shapes from the original script: D=10 hidden, N=4 context words per side,
    # V = vocabulary size of the passage (~150 unique words), tiny batch.
    N, D, V = 4, 10, 150
    B = 2

    key = jax.random.PRNGKey(0)
    k_idx, k_w1, k_b1, k_w2, k_b2 = jax.random.split(key, 5)

    # nn.Linear default init; weights stored pre-transposed as (in, out).
    k1 = 1.0 / jnp.sqrt(jnp.float32(V))
    w1_t = jax.random.uniform(k_w1, (V, D), jnp.float32, -k1, k1)   # Linear1 weight^T
    b1 = jax.random.uniform(k_b1, (1, D), jnp.float32, -k1, k1)     # Linear1 bias
    k2 = 1.0 / jnp.sqrt(jnp.float32(D))
    w2_t = jax.random.uniform(k_w2, (D, V), jnp.float32, -k2, k2)   # Linear2 weight^T
    b2 = jax.random.uniform(k_b2, (1, V), jnp.float32, -k2, k2)     # Linear2 bias

    # Context word indices (what context_to_vec() one-hot encodes).
    ctx_ids = jax.random.randint(k_idx, (B, 2 * N), 0, V, dtype=jnp.int32)

    # Kernel on indices (preferred fast path).
    out = cbow_forward_ids(ctx_ids, w1_t, b1, w2_t, b2, N=N, D=D, V=V)
    out = jax.block_until_ready(out)
    assert out.shape == (B, V)

    # Exact-f32 PyTorch-semantics reference on the equivalent one-hot input.
    x = jax.nn.one_hot(ctx_ids, V, dtype=jnp.float32).reshape(B, 2 * N * V)
    ref = _reference_f32(x, w1_t, b1, w2_t, b2, N, D, V)
    err = float(jnp.max(jnp.abs(out - ref)))
    assert err < 1e-4, f"max abs err vs f32 reference: {err}"

    # Module-interface wrapper (one-hot input) must agree with the index path.
    out2 = cbow_forward(x, w1_t, b1, w2_t, b2, N=N, D=D, V=V)
    out2 = jax.block_until_ready(out2)
    assert float(jnp.max(jnp.abs(out2 - out))) < 1e-6

    print("KERNEL_OK")
</pallas_src>

<mosaic_0001>
module attributes {stable_mosaic.version = 11 : i64} {
  func.func @kernel(%arg0: i32, %arg1: memref<8x8xi32, #tpu.memory_space<vmem>>, %arg2: memref<256x128xf32, #tpu.memory_space<vmem>>, %arg3: memref<128x256xf32, #tpu.memory_space<vmem>>, %arg4: memref<1x256xf32, #tpu.memory_space<vmem>>, %arg5: memref<8x256xf32, #tpu.memory_space<vmem>>) attributes {dimension_semantics = [#tpu.dimension_semantics<parallel>], iteration_bounds = array<i64: 1>, scalar_prefetch = 0 : i64, scratch_operands = 0 : i64, tpu.core_type = #tpu.core_type<tc>, window_params = [{transform_indices = @transform_0, window_bounds = array<i64: 8, 8>}, {pipeline_mode = #tpu.pipeline_mode<synchronous>, transform_indices = @transform_1, window_bounds = array<i64: 256, 128>}, {pipeline_mode = #tpu.pipeline_mode<synchronous>, transform_indices = @transform_2, window_bounds = array<i64: 128, 256>}, {pipeline_mode = #tpu.pipeline_mode<synchronous>, transform_indices = @transform_3, window_bounds = array<i64: 1, 256>}, {transform_indices = @transform_4, window_bounds = array<i64: 8, 256>}]} {
    %c0 = arith.constant 0 : index
    %c0_0 = arith.constant 0 : index
    %0 = vector.load %arg1[%c0, %c0_0] : memref<8x8xi32, #tpu.memory_space<vmem>>, vector<8x8xi32>
    %1 = tpu.iota {dimensions = array<i32: 1>} : vector<8x256xi32>
    %c0_i32 = arith.constant 0 : i32
    %2 = vector.broadcast %c0_i32 : i32 to vector<8x256xi32>
    %3 = vector.extract_strided_slice %0 {offsets = [0, 0], sizes = [8, 1], strides = [1, 1]} : vector<8x8xi32> to vector<8x1xi32>
    %4 = vector.broadcast %3 : vector<8x1xi32> to vector<8x256xi32>
    %5 = arith.cmpi eq, %1, %4 : vector<8x256xi32>
    %6 = arith.extui %5 : vector<8x256xi1> to vector<8x256xi32>
    %7 = arith.addi %2, %6 : vector<8x256xi32>
    %8 = vector.extract_strided_slice %0 {offsets = [0, 1], sizes = [8, 1], strides = [1, 1]} : vector<8x8xi32> to vector<8x1xi32>
    %9 = vector.broadcast %8 : vector<8x1xi32> to vector<8x256xi32>
    %10 = arith.cmpi eq, %1, %9 : vector<8x256xi32>
    %11 = arith.extui %10 : vector<8x256xi1> to vector<8x256xi32>
    %12 = arith.addi %7, %11 : vector<8x256xi32>
    %13 = vector.extract_strided_slice %0 {offsets = [0, 2], sizes = [8, 1], strides = [1, 1]} : vector<8x8xi32> to vector<8x1xi32>
    %14 = vector.broadcast %13 : vector<8x1xi32> to vector<8x256xi32>
    %15 = arith.cmpi eq, %1, %14 : vector<8x256xi32>
    %16 = arith.extui %15 : vector<8x256xi1> to vector<8x256xi32>
    %17 = arith.addi %12, %16 : vector<8x256xi32>
    %18 = vector.extract_strided_slice %0 {offsets = [0, 3], sizes = [8, 1], strides = [1, 1]} : vector<8x8xi32> to vector<8x1xi32>
    %19 = vector.broadcast %18 : vector<8x1xi32> to vector<8x256xi32>
    %20 = arith.cmpi eq, %1, %19 : vector<8x256xi32>
    %21 = arith.extui %20 : vector<8x256xi1> to vector<8x256xi32>
    %22 = arith.addi %17, %21 : vector<8x256xi32>
    %23 = vector.extract_strided_slice %0 {offsets = [0, 4], sizes = [8, 1], strides = [1, 1]} : vector<8x8xi32> to vector<8x1xi32>
    %24 = vector.broadcast %23 : vector<8x1xi32> to vector<8x256xi32>
    %25 = arith.cmpi eq, %1, %24 : vector<8x256xi32>
    %26 = arith.extui %25 : vector<8x256xi1> to vector<8x256xi32>
    %27 = arith.addi %22, %26 : vector<8x256xi32>
    %28 = vector.extract_strided_slice %0 {offsets = [0, 5], sizes = [8, 1], strides = [1, 1]} : vector<8x8xi32> to vector<8x1xi32>
    %29 = vector.broadcast %28 : vector<8x1xi32> to vector<8x256xi32>
    %30 = arith.cmpi eq, %1, %29 : vector<8x256xi32>
    %31 = arith.extui %30 : vector<8x256xi1> to vector<8x256xi32>
    %32 = arith.addi %27, %31 : vector<8x256xi32>
    %33 = vector.extract_strided_slice %0 {offsets = [0, 6], sizes = [8, 1], strides = [1, 1]} : vector<8x8xi32> to vector<8x1xi32>
    %34 = vector.broadcast %33 : vector<8x1xi32> to vector<8x256xi32>
    %35 = arith.cmpi eq, %1, %34 : vector<8x256xi32>
    %36 = arith.extui %35 : vector<8x256xi1> to vector<8x256xi32>
    %37 = arith.addi %32, %36 : vector<8x256xi32>
    %38 = vector.extract_strided_slice %0 {offsets = [0, 7], sizes = [8, 1], strides = [1, 1]} : vector<8x8xi32> to vector<8x1xi32>
    %39 = vector.broadcast %38 : vector<8x1xi32> to vector<8x256xi32>
    %40 = arith.cmpi eq, %1, %39 : vector<8x256xi32>
    %41 = arith.extui %40 : vector<8x256xi1> to vector<8x256xi32>
    %42 = arith.addi %37, %41 : vector<8x256xi32>
    %43 = arith.sitofp %42 : vector<8x256xi32> to vector<8x256xf32>
    %c0_1 = arith.constant 0 : index
    %c0_2 = arith.constant 0 : index
    %44 = vector.load %arg2[%c0_1, %c0_2] : memref<256x128xf32, #tpu.memory_space<vmem>>, vector<256x128xf32>
    %cst = arith.constant dense<0.000000e+00> : vector<8x128xf32>
    %45 = tpu.matmul %43, %44, %cst {dimension_numbers = #tpu.dot_dimension_numbers<[1], [0], [0], [1], [0, 0, 1, 1], [], []>} : vector<8x256xf32>, vector<256x128xf32>, vector<8x128xf32> -> vector<8x128xf32>
    %c0_3 = arith.constant 0 : index
    %c0_4 = arith.constant 0 : index
    %46 = vector.load %arg3[%c0_3, %c0_4] : memref<128x256xf32, #tpu.memory_space<vmem>>, vector<128x256xf32>
    %cst_5 = arith.constant dense<0.000000e+00> : vector<8x256xf32>
    %47 = tpu.matmul %45, %46, %cst_5 {dimension_numbers = #tpu.dot_dimension_numbers<[1], [0], [0], [1], [0, 0, 1, 1], [], []>} : vector<8x128xf32>, vector<128x256xf32>, vector<8x256xf32> -> vector<8x256xf32>
    %c0_6 = arith.constant 0 : index
    %c0_7 = arith.constant 0 : index
    %48 = vector.load %arg4[%c0_6, %c0_7] : memref<1x256xf32, #tpu.memory_space<vmem>>, vector<1x256xf32>
    %49 = vector.broadcast %48 : vector<1x256xf32> to vector<8x256xf32>
    %50 = arith.addf %47, %49 : vector<8x256xf32>
    %cst_8 = arith.constant dense<0xFF800000> : vector<8xf32>
    %51 = vector.multi_reduction <maximumf>, %50, %cst_8 [1] : vector<8x256xf32> to vector<8xf32>
    %52 = vector.shape_cast %51 : vector<8xf32> to vector<8x1xf32>
    %53 = vector.broadcast %52 : vector<8x1xf32> to vector<8x256xf32>
    %54 = arith.subf %50, %53 : vector<8x256xf32>
    %55 = math.exp %54 : vector<8x256xf32>
    %cst_9 = arith.constant dense<0.000000e+00> : vector<8xf32>
    %56 = vector.multi_reduction <add>, %55, %cst_9 [1] : vector<8x256xf32> to vector<8xf32>
    %57 = vector.shape_cast %56 : vector<8xf32> to vector<8x1xf32>
    %58 = math.log %57 : vector<8x1xf32>
    %59 = vector.broadcast %58 : vector<8x1xf32> to vector<8x256xf32>
    %60 = arith.subf %54, %59 : vector<8x256xf32>
    %c0_10 = arith.constant 0 : index
    %c0_11 = arith.constant 0 : index
    %61 = vector.load %arg5[%c0_10, %c0_11] : memref<8x256xf32, #tpu.memory_space<vmem>>, vector<8x256xf32>
    tpu.vector_store %arg5[%c0_10, %c0_11], %60 {strides = array<i32>} : memref<8x256xf32, #tpu.memory_space<vmem>>, vector<8x256xf32>,
    return
  }
  func.func @transform_0(%arg0: i32) -> (i32, i32) {
    %c0_i32 = arith.constant 0 : i32
    %c0_i32_0 = arith.constant 0 : i32
    return %arg0, %c0_i32 : i32, i32
  }
  func.func @transform_1(%arg0: i32) -> (i32, i32) {
    %c0_i32 = arith.constant 0 : i32
    %c0_i32_0 = arith.constant 0 : i32
    %c0_i32_1 = arith.constant 0 : i32
    return %c0_i32, %c0_i32_0 : i32, i32
  }
  func.func @transform_2(%arg0: i32) -> (i32, i32) {
    %c0_i32 = arith.constant 0 : i32
    %c0_i32_0 = arith.constant 0 : i32
    %c0_i32_1 = arith.constant 0 : i32
    return %c0_i32, %c0_i32_0 : i32, i32
  }
  func.func @transform_3(%arg0: i32) -> (i32, i32) {
    %c0_i32 = arith.constant 0 : i32
    %c0_i32_0 = arith.constant 0 : i32
    %c0_i32_1 = arith.constant 0 : i32
    return %c0_i32, %c0_i32_0 : i32, i32
  }
  func.func @transform_4(%arg0: i32) -> (i32, i32) {
    %c0_i32 = arith.constant 0 : i32
    %c0_i32_0 = arith.constant 0 : i32
    return %arg0, %c0_i32 : i32, i32
  }
}

</mosaic_0001>

<llo_original>
// kernel: cbow_forward_ids.1
$region0: #{cbow_forward_ids.1}
  #allocation0 [shape = 'u32[]', space=smem, size = 0x4, offset = 0x4, fixed_abs, tag = 'smem constant byte address 0x4 - core index']
  #allocation1 [shape = 'u32[144,128]{1,0:T(1,128)}', space=vmem, size = 0x12000, scoped, tag = 'internal scratch']
  %s0 = inlined_call_operand.vmem [shape: s32[8,8], index: 0, kind: input, shape index: {}]
  %s1 = inlined_call_operand.vmem [shape: f32[256,128], index: 1, kind: input, shape index: {}]
  %s2 = inlined_call_operand.vmem [shape: f32[128,256], index: 2, kind: input, shape index: {}]
  %s3 = inlined_call_operand.vmem [shape: f32[1,256], index: 3, kind: input, shape index: {}]
  %s4 = inlined_call_operand.vmem [shape: f32[8,256], index: 4, kind: output, shape index: {}]
  %s5 = sld [smem:[#allocation0]]
  $region26: #{cbow_forward_ids.1} parent=0
    _
  %s7 = ssub.s32 1, %s5
  %s8 = scalar_select 0, %s7, %s5
  // Predicated region
  $region2: #{cbow_forward_ids.1} parent=0 // pred_check
    _
  $region3: #{cbow_forward_ids.1} parent=0 // pred_check_branch
    %10 = sbr.rel (0) target = $region5
  $region4: #{cbow_forward_ids.1} parent=0 // pred_region
    _
  $region5: #{cbow_forward_ids.1} parent=0 // pred_fallthru
    _
  // Predicated region
  $region6: #{cbow_forward_ids.1} parent=0 // pred_check
    _
  $region7: #{cbow_forward_ids.1} parent=0 // pred_check_branch
    %12 = sbr.rel (0) target = $region9
  $region8: #{cbow_forward_ids.1} parent=0 // pred_region
    _
  $region9: #{cbow_forward_ids.1} parent=0 // pred_fallthru
    _
  // Predicated region
  $region10: #{cbow_forward_ids.1} parent=0 // pred_check
    _
  $region11: #{cbow_forward_ids.1} parent=0 // pred_check_branch
    %14 = sbr.rel (0) target = $region13
  $region12: #{cbow_forward_ids.1} parent=0 // pred_region
    _
  $region13: #{cbow_forward_ids.1} parent=0 // pred_fallthru
    _
  // Predicated region
  $region14: #{cbow_forward_ids.1} parent=0 // pred_check
    _
  $region15: #{cbow_forward_ids.1} parent=0 // pred_check_branch
    %16 = sbr.rel (0) target = $region17
  $region16: #{cbow_forward_ids.1} parent=0 // pred_region
    _
  $region17: #{cbow_forward_ids.1} parent=0 // pred_fallthru
    _
  %v17 = vld [vmem:[%s0] sm:$0xff]
  %v18 = vlaneseq
  %v19 = vand.u32 %v18, 127
  %v20 = vadd.s32 %v19, 128
  %21 = vset.pattern.permute.xlu0 0
  %22 = vperm.xlu0 %21, %v17
  %v23 = vpop.permute.xlu0 %22
  %vm24 = vcmp.eq.s32.totalorder %v19, %v23
  %vm25 = vcmp.eq.s32.totalorder %v20, %v23
  %v26 = vsel %vm24, 1, 0
  %v27 = vsel %vm25, 1, 0
  %28 = vset.pattern.permute.xlu0 1
  %29 = vperm.xlu0 %28, %v17
  %v30 = vpop.permute.xlu0 %29
  %vm31 = vcmp.eq.s32.totalorder %v19, %v30
  %vm32 = vcmp.eq.s32.totalorder %v20, %v30
  %v33 = vsel %vm31, 1, 0
  %v34 = vsel %vm32, 1, 0
  %v35 = vadd.s32 %v26, %v33
  %v36 = vadd.s32 %v27, %v34
  %37 = vset.pattern.permute.xlu0 2
  %38 = vperm.xlu0 %37, %v17
  %v39 = vpop.permute.xlu0 %38
  %vm40 = vcmp.eq.s32.totalorder %v19, %v39
  %vm41 = vcmp.eq.s32.totalorder %v20, %v39
  %v42 = vsel %vm40, 1, 0
  %v43 = vsel %vm41, 1, 0
  %v44 = vadd.s32 %v35, %v42
  %v45 = vadd.s32 %v36, %v43
  %46 = vset.pattern.permute.xlu0 3
  %47 = vperm.xlu0 %46, %v17
  %v48 = vpop.permute.xlu0 %47
  %vm49 = vcmp.eq.s32.totalorder %v19, %v48
  %vm50 = vcmp.eq.s32.totalorder %v20, %v48
  %v51 = vsel %vm49, 1, 0
  %v52 = vsel %vm50, 1, 0
  %v53 = vadd.s32 %v44, %v51
  %v54 = vadd.s32 %v45, %v52
  %55 = vset.pattern.permute.xlu0 4
  %56 = vperm.xlu0 %55, %v17
  %v57 = vpop.permute.xlu0 %56
  %vm58 = vcmp.eq.s32.totalorder %v19, %v57
  %vm59 = vcmp.eq.s32.totalorder %v20, %v57
  %v60 = vsel %vm58, 1, 0
  %v61 = vsel %vm59, 1, 0
  %v62 = vadd.s32 %v53, %v60
  %v63 = vadd.s32 %v54, %v61
  %64 = vset.pattern.permute.xlu0 5
  %65 = vperm.xlu0 %64, %v17
  %v66 = vpop.permute.xlu0 %65
  %vm67 = vcmp.eq.s32.totalorder %v19, %v66
  %vm68 = vcmp.eq.s32.totalorder %v20, %v66
  %v69 = vsel %vm67, 1, 0
  %v70 = vsel %vm68, 1, 0
  %v71 = vadd.s32 %v62, %v69
  %v72 = vadd.s32 %v63, %v70
  %73 = vset.pattern.permute.xlu0 6
  %74 = vperm.xlu0 %73, %v17
  %v75 = vpop.permute.xlu0 %74
  %vm76 = vcmp.eq.s32.totalorder %v19, %v75
  %vm77 = vcmp.eq.s32.totalorder %v20, %v75
  %v78 = vsel %vm76, 1, 0
  %v79 = vsel %vm77, 1, 0
  %v80 = vadd.s32 %v71, %v78
  %v81 = vadd.s32 %v72, %v79
  %82 = vset.pattern.permute.xlu0 7
  %83 = vperm.xlu0 %82, %v17
  %v84 = vpop.permute.xlu0 %83
  %vm85 = vcmp.eq.s32.totalorder %v19, %v84
  %vm86 = vcmp.eq.s32.totalorder %v20, %v84
  %v87 = vsel %vm85, 1, 0
  %v88 = vsel %vm86, 1, 0
  %v89 = vadd.s32 %v80, %v87
  %v90 = vadd.s32 %v81, %v88
  %v91 = vcvt.s32.f32 %v89
  %v92 = vcvt.s32.f32 %v90
  %v93 = vld [vmem:[%s1] sm:$0xff]
  %v94 = vld [vmem:[%s1 + $0x8] sm:$0xff]
  %v95 = vld [vmem:[%s1 + $0x10] sm:$0xff]
  %v96 = vld [vmem:[%s1 + $0x18] sm:$0xff]
  %v97 = vld [vmem:[%s1 + $0x20] sm:$0xff]
  %v98 = vld [vmem:[%s1 + $0x28] sm:$0xff]
  %v99 = vld [vmem:[%s1 + $0x30] sm:$0xff]
  %v100 = vld [vmem:[%s1 + $0x38] sm:$0xff]
  %v101 = vld [vmem:[%s1 + $0x40] sm:$0xff]
  %v102 = vld [vmem:[%s1 + $0x48] sm:$0xff]
  %v103 = vld [vmem:[%s1 + $0x50] sm:$0xff]
  %v104 = vld [vmem:[%s1 + $0x58] sm:$0xff]
  %v105 = vld [vmem:[%s1 + $0x60] sm:$0xff]
  %v106 = vld [vmem:[%s1 + $0x68] sm:$0xff]
  %v107 = vld [vmem:[%s1 + $0x70] sm:$0xff]
  %v108 = vld [vmem:[%s1 + $0x78] sm:$0xff]
  %v109 = vld [vmem:[%s1 + $0x80] sm:$0xff]
  %v110 = vld [vmem:[%s1 + $0x88] sm:$0xff]
  %v111 = vld [vmem:[%s1 + $0x90] sm:$0xff]
  %v112 = vld [vmem:[%s1 + $0x98] sm:$0xff]
  %v113 = vld [vmem:[%s1 + $0xa0] sm:$0xff]
  %v114 = vld [vmem:[%s1 + $0xa8] sm:$0xff]
  %v115 = vld [vmem:[%s1 + $0xb0] sm:$0xff]
  %v116 = vld [vmem:[%s1 + $0xb8] sm:$0xff]
  %v117 = vld [vmem:[%s1 + $0xc0] sm:$0xff]
  %v118 = vld [vmem:[%s1 + $0xc8] sm:$0xff]
  %v119 = vld [vmem:[%s1 + $0xd0] sm:$0xff]
  %v120 = vld [vmem:[%s1 + $0xd8] sm:$0xff]
  %v121 = vld [vmem:[%s1 + $0xe0] sm:$0xff]
  %v122 = vld [vmem:[%s1 + $0xe8] sm:$0xff]
  %v123 = vld [vmem:[%s1 + $0xf0] sm:$0xff]
  %v124 = vld [vmem:[%s1 + $0xf8] sm:$0xff]
  %125 = vmatprep.subr.mxu0 0.0
  %126 = vmatpush1.msra.mxu0 %v108
  %127 = vmatprep.subr.mxu0 0.0
  %128 = vmatpush1.msra.mxu0 %v107
  %129 = vmatprep.subr.mxu0 0.0
  %130 = vmatpush1.msra.mxu0 %v106
  %131 = vmatprep.subr.mxu0 0.0
  %132 = vmatpush1.msra.mxu0 %v105
  %133 = vmatprep.subr.mxu0 0.0
  %134 = vmatpush1.msra.mxu0 %v104
  %135 = vmatprep.subr.mxu0 0.0
  %136 = vmatpush1.msra.mxu0 %v103
  %137 = vmatprep.subr.mxu0 0.0
  %138 = vmatpush1.msra.mxu0 %v102
  %139 = vmatprep.subr.mxu0 0.0
  %140 = vmatpush1.msra.mxu0 %v101
  %141 = vmatprep.subr.mxu0 0.0
  %142 = vmatpush1.msra.mxu0 %v100
  %143 = vmatprep.subr.mxu0 0.0
  %144 = vmatpush1.msra.mxu0 %v99
  %145 = vmatprep.subr.mxu0 0.0
  %146 = vmatpush1.msra.mxu0 %v98
  %147 = vmatprep.subr.mxu0 0.0
  %148 = vmatpush1.msra.mxu0 %v97
  %149 = vmatprep.subr.mxu0 0.0
  %150 = vmatpush1.msra.mxu0 %v96
  %151 = vmatprep.subr.mxu0 0.0
  %152 = vmatpush1.msra.mxu0 %v95
  %153 = vmatprep.subr.mxu0 0.0
  %154 = vmatpush1.msra.mxu0 %v94
  %155 = vmatprep.subr.mxu0 0.0
  %156 = vmatpush1.msra.mxu0 %v93
  %157 = vmatprep.subr.mxu0 0.0
  %158 = vmatpush2.msra.mxu0 %v124
  %159 = vmatprep.subr.mxu0 0.0
  %160 = vmatpush2.msra.mxu0 %v123
  %161 = vmatprep.subr.mxu0 0.0
  %162 = vmatpush2.msra.mxu0 %v122
  %163 = vmatprep.subr.mxu0 0.0
  %164 = vmatpush2.msra.mxu0 %v121
  %165 = vmatprep.subr.mxu0 0.0
  %166 = vmatpush2.msra.mxu0 %v120
  %167 = vmatprep.subr.mxu0 0.0
  %168 = vmatpush2.msra.mxu0 %v119
  %169 = vmatprep.subr.mxu0 0.0
  %170 = vmatpush2.msra.mxu0 %v118
  %171 = vmatprep.subr.mxu0 0.0
  %172 = vmatpush2.msra.mxu0 %v117
  %173 = vmatprep.subr.mxu0 0.0
  %174 = vmatpush2.msra.mxu0 %v116
  %175 = vmatprep.subr.mxu0 0.0
  %176 = vmatpush2.msra.mxu0 %v115
  %177 = vmatprep.subr.mxu0 0.0
  %178 = vmatpush2.msra.mxu0 %v114
  %179 = vmatprep.subr.mxu0 0.0
  %180 = vmatpush2.msra.mxu0 %v113
  %181 = vmatprep.subr.mxu0 0.0
  %182 = vmatpush2.msra.mxu0 %v112
  %183 = vmatprep.subr.mxu0 0.0
  %184 = vmatpush2.msra.mxu0 %v111
  %185 = vmatprep.subr.mxu0 0.0
  %186 = vmatpush2.msra.mxu0 %v110
  %187 = vmatprep.subr.mxu0 0.0
  %188 = vmatpush2.msra.mxu0 %v109
  %189 = vmatprep.mubr.f32.mxu0 %v92
  %190 = vmatmul.mubr.f32.gmra.mxu0 %v91
  %v191 = vpop.f32.mrf.mxu0
  %v192 = vadd.f32 0.0, %v191
  %v193 = vpop.f32.mrf.mxu0
  %194 = vdwg.mxu0
  %v195 = vld [vmem:[%s2] sm:$0xff]
  %v196 = vld [vmem:[%s2 + $0x8] sm:$0xff]
  %v197 = vld [vmem:[%s2 + $0x10] sm:$0xff]
  %v198 = vld [vmem:[%s2 + $0x18] sm:$0xff]
  %v199 = vld [vmem:[%s2 + $0x20] sm:$0xff]
  %v200 = vld [vmem:[%s2 + $0x28] sm:$0xff]
  %v201 = vld [vmem:[%s2 + $0x30] sm:$0xff]
  %v202 = vld [vmem:[%s2 + $0x38] sm:$0xff]
  %v203 = vld [vmem:[%s2 + $0x40] sm:$0xff]
  %v204 = vld [vmem:[%s2 + $0x48] sm:$0xff]
  %v205 = vld [vmem:[%s2 + $0x50] sm:$0xff]
  %v206 = vld [vmem:[%s2 + $0x58] sm:$0xff]
  %v207 = vld [vmem:[%s2 + $0x60] sm:$0xff]
  %v208 = vld [vmem:[%s2 + $0x68] sm:$0xff]
  %v209 = vld [vmem:[%s2 + $0x70] sm:$0xff]
  %v210 = vld [vmem:[%s2 + $0x78] sm:$0xff]
  %v211 = vld [vmem:[%s2 + $0x80] sm:$0xff]
  %v212 = vld [vmem:[%s2 + $0x88] sm:$0xff]
  %v213 = vld [vmem:[%s2 + $0x90] sm:$0xff]
  %v214 = vld [vmem:[%s2 + $0x98] sm:$0xff]
  %v215 = vld [vmem:[%s2 + $0xa0] sm:$0xff]
  %v216 = vld [vmem:[%s2 + $0xa8] sm:$0xff]
  %v217 = vld [vmem:[%s2 + $0xb0] sm:$0xff]
  %v218 = vld [vmem:[%s2 + $0xb8] sm:$0xff]
  %v219 = vld [vmem:[%s2 + $0xc0] sm:$0xff]
  %v220 = vld [vmem:[%s2 + $0xc8] sm:$0xff]
  %v221 = vld [vmem:[%s2 + $0xd0] sm:$0xff]
  %v222 = vld [vmem:[%s2 + $0xd8] sm:$0xff]
  %v223 = vld [vmem:[%s2 + $0xe0] sm:$0xff]
  %v224 = vld [vmem:[%s2 + $0xe8] sm:$0xff]
  %v225 = vld [vmem:[%s2 + $0xf0] sm:$0xff]
  %v226 = vld [vmem:[%s2 + $0xf8] sm:$0xff]
  %v227 = vld [vmem:[%s3] sm:$0x3]
  %v229 = vlaneseq
  %v230 = vshrl.u32 %v229, 7
  %v231 = vsub.s32 0, %v230
  %v232 = vrot.slane %v227, %v231
  %v233 = vlaneseq
  %v234 = vshrl.u32 %v233, 7
  %v235 = vsub.s32 1, %v234
  %v236 = vrot.slane %v227, %v235
  %239 = vmatprep.subr.mxu0 %v226
  %240 = vmatpush1.msra.mxu0 %v225
  %241 = vmatprep.subr.mxu0 %v224
  %242 = vmatpush1.msra.mxu0 %v223
  %243 = vmatprep.subr.mxu0 %v222
  %244 = vmatpush1.msra.mxu0 %v221
  %245 = vmatprep.subr.mxu0 %v220
  %246 = vmatpush1.msra.mxu0 %v219
  %247 = vmatprep.subr.mxu0 %v218
  %248 = vmatpush1.msra.mxu0 %v217
  %249 = vmatprep.subr.mxu0 %v216
  %250 = vmatpush1.msra.mxu0 %v215
  %251 = vmatprep.subr.mxu0 %v214
  %252 = vmatpush1.msra.mxu0 %v213
  %253 = vmatprep.subr.mxu0 %v212
  %254 = vmatpush1.msra.mxu0 %v211
  %255 = vmatprep.subr.mxu0 %v210
  %256 = vmatpush1.msra.mxu0 %v209
  %257 = vmatprep.subr.mxu0 %v208
  %258 = vmatpush1.msra.mxu0 %v207
  %259 = vmatprep.subr.mxu0 %v206
  %260 = vmatpush1.msra.mxu0 %v205
  %261 = vmatprep.subr.mxu0 %v204
  %262 = vmatpush1.msra.mxu0 %v203
  %263 = vmatprep.subr.mxu0 %v202
  %264 = vmatpush1.msra.mxu0 %v201
  %265 = vmatprep.subr.mxu0 %v200
  %266 = vmatpush1.msra.mxu0 %v199
  %267 = vmatprep.subr.mxu0 %v198
  %268 = vmatpush1.msra.mxu0 %v197
  %269 = vmatprep.subr.mxu0 %v196
  %270 = vmatpush1.msra.mxu0 %v195
  %271 = vmatprep.subr.mxu0 0.0
  %272 = vmatpush2.msra.mxu0 0.0
  %273 = vmatprep.subr.mxu0 0.0
  %274 = vmatpush2.msra.mxu0 0.0
  %275 = vmatprep.subr.mxu0 0.0
  %276 = vmatpush2.msra.mxu0 0.0
  %277 = vmatprep.subr.mxu0 0.0
  %278 = vmatpush2.msra.mxu0 0.0
  %279 = vmatprep.subr.mxu0 0.0
  %280 = vmatpush2.msra.mxu0 0.0
  %281 = vmatprep.subr.mxu0 0.0
  %282 = vmatpush2.msra.mxu0 0.0
  %283 = vmatprep.subr.mxu0 0.0
  %284 = vmatpush2.msra.mxu0 0.0
  %285 = vmatprep.subr.mxu0 0.0
  %286 = vmatpush2.msra.mxu0 0.0
  %287 = vmatprep.subr.mxu0 0.0
  %288 = vmatpush2.msra.mxu0 0.0
  %289 = vmatprep.subr.mxu0 0.0
  %290 = vmatpush2.msra.mxu0 0.0
  %291 = vmatprep.subr.mxu0 0.0
  %292 = vmatpush2.msra.mxu0 0.0
  %293 = vmatprep.subr.mxu0 0.0
  %294 = vmatpush2.msra.mxu0 0.0
  %295 = vmatprep.subr.mxu0 0.0
  %296 = vmatpush2.msra.mxu0 0.0
  %297 = vmatprep.subr.mxu0 0.0
  %298 = vmatpush2.msra.mxu0 0.0
  %299 = vmatprep.subr.mxu0 0.0
  %300 = vmatpush2.msra.mxu0 0.0
  %301 = vmatprep.subr.mxu0 0.0
  %302 = vmatpush2.msra.mxu0 0.0
  %303 = vmatprep.mubr.f32.mxu0 0.0
  %304 = vmatmul.mubr.f32.gmra.mxu0 %v192
  %v305 = vpop.f32.mrf.mxu0
  %v306 = vadd.f32 %v232, %v305
  %v307 = vpop.f32.mrf.mxu0
  %v308 = vadd.f32 %v236, %v307
  %309 = vdwg.mxu0
  %v310 = vmax.f32 %v306, %v308
  %311 = vmax.xlane.f32.xlu0 %v310
  %v312 = vpop.xlane.xlu0 %311
  %v313 = vsub.f32 %v306, %v312
  %v314 = vsub.f32 %v308, %v312
  %v315 = vmul.f32 %v313, 1.442695
  %v316 = vpow.pop %v315
  %v317 = vmul.f32 %v314, 1.442695
  %v318 = vpow.pop %v317
  %v319 = vadd.f32 %v316, %v318
  %320 = vadd.xlane.f32.xlu0 %v319
  %v321 = vpop.xlane.xlu0 %320
  %v322 = vlog2.pop %v321
  %v323 = vmul.f32 %v322, 0.6931472
  %v324 = vsub.f32 %v313, %v323
  %v325 = vsub.f32 %v314, %v323
  %326 = vst [vmem:[%s4] sm:$0xff] %v324
  %327 = vst [vmem:[%s4 + $0x8] sm:$0xff] %v325
  // Predicated region
  $region18: #{cbow_forward_ids.1} parent=0 // pred_check
    _
  $region19: #{cbow_forward_ids.1} parent=0 // pred_check_branch
    %329 = sbr.rel (0) target = $region21
  $region20: #{cbow_forward_ids.1} parent=0 // pred_region
    _
  $region21: #{cbow_forward_ids.1} parent=0 // pred_fallthru
    _
  // Predicated region
  $region22: #{cbow_forward_ids.1} parent=0 // pred_check
    _
  $region23: #{cbow_forward_ids.1} parent=0 // pred_check_branch
    %331 = sbr.rel (0) target = $region25
  $region24: #{cbow_forward_ids.1} parent=0 // pred_region
    _
  $region25: #{cbow_forward_ids.1} parent=0 // pred_fallthru
    _

</llo_original>
